<compile_context>
chip_gen: v6e
topology: v6e:2x2x1
jax: 0.10.0
libtpu: 0.0.40
codegen_flags: <defaults>
</compile_context>

<pallas_src>
import jax
import jax.numpy as jnp
from jax import lax
from jax.experimental import pallas as pl
from jax.experimental.pallas import tpu as pltpu

B = 4          # per-mini-batch size (matches labels_A / labels_B length)
D = 384        # embedding dim of all-MiniLM-L6-v2
H = 128        # hidden dim of both heads
C_A = 2        # classification classes
C_B = 3        # sentiment classes
NPAD = 128     # lane-dense padded width of the fused logits output


def multitask_kernel(labels_a_ref, labels_b_ref, emb_ref,
                     w1_ref, b1_ref, w2_ref, b2_ref, logits_ref):
    i = pl.program_id(0)   # mini-batch index within this call

    # Fused first layer for both heads: [B, D] @ [D, 2H].
    # f32 embeddings are cast to bf16 here (one VPU pass) instead of host-side.
    e = emb_ref[...].astype(jnp.bfloat16)
    h = jnp.dot(e, w1_ref[...], preferred_element_type=jnp.float32)
    h = jnp.maximum(h + b1_ref[...], 0.0)

    # Fused block-diagonal second layer, padded to 128 output lanes:
    # columns [0, C_A) = head A logits, [C_A, C_A+C_B) = head B logits, rest zero.
    logits = jnp.dot(h.astype(jnp.bfloat16), w2_ref[...],
                     preferred_element_type=jnp.float32) + b2_ref[...]

    # ---- mean cross-entropy for both heads (f32 epilogue) ----
    col = lax.broadcasted_iota(jnp.int32, (B, NPAD), 1)
    row = lax.broadcasted_iota(jnp.int32, (B, NPAD), 0)
    neg = jnp.float32(-1e30)    # f32 sentinel (keep f32 even if matmuls are bf16)

    mask_a = col < C_A
    mask_b = jnp.logical_and(col >= C_A, col < C_A + C_B)

    za = jnp.where(mask_a, logits, neg)
    zb = jnp.where(mask_b, logits, neg)
    ma = jnp.max(za, axis=-1, keepdims=True)                          # (B, 1)
    mb = jnp.max(zb, axis=-1, keepdims=True)                          # (B, 1)
    sa = jnp.sum(jnp.where(mask_a, jnp.exp(za - ma), 0.0),
                 axis=-1, keepdims=True)                              # (B, 1)
    sb = jnp.sum(jnp.where(mask_b, jnp.exp(zb - mb), 0.0),
                 axis=-1, keepdims=True)                              # (B, 1)
    # Merged single log: lse_a + lse_b = m_a + m_b + log(s_a * s_b).
    lse_sum = jnp.sum(ma + mb + jnp.log(sa * sb), axis=0, keepdims=True)  # (1, 1)

    # Combined hit mask for both heads (no materialized one-hot accumulator).
    # NOTE: out-of-range labels would silently drop their picked logit.
    hit = None
    for b in range(B):                      # B=4: tiny static unrolled loop
        la = labels_a_ref[i, b]
        lb = labels_b_ref[i, b] + C_A
        hit_b = jnp.logical_and(row == b,
                                jnp.logical_or(col == la, col == lb))
        hit = hit_b if hit is None else jnp.logical_or(hit, hit_b)

    picked = jnp.sum(jnp.where(hit, logits, 0.0),
                     axis=-1, keepdims=True)                          # (B, 1)
    picked_sum = jnp.sum(picked, axis=0, keepdims=True)               # (1, 1)

    # total_loss = (mean CE_A + mean CE_B) / 2
    loss = (lse_sum - picked_sum) * (1.0 / (2.0 * B))                 # (1, 1)

    # Stash the scalar loss in the always-zero padded lane NPAD-1 (extracted
    # host-side from row 0); avoids a separate SMEM output + writeback path.
    logits_ref[...] = jnp.where(col == NPAD - 1, loss, logits)


def pack_params(params):
    """One-time host-side packing: fuse/pad weights and pre-cast to bf16."""
    wa1, ba1, wa2, ba2, wb1, bb1, wb2, bb2 = params

    # Fused first layer: [D, 2H] weights, [1, 2H] bias.
    w1 = jnp.concatenate([wa1, wb1], axis=1).astype(jnp.bfloat16)
    b1 = jnp.concatenate([ba1, bb1], axis=1)                      # f32

    # Block-diagonal second layer, padded to NPAD lanes for a lane-dense output.
    w2 = jnp.zeros((2 * H, NPAD), jnp.float32)
    w2 = w2.at[:H, :C_A].set(wa2)
    w2 = w2.at[H:, C_A:C_A + C_B].set(wb2)
    w2 = w2.astype(jnp.bfloat16)

    b2 = jnp.zeros((1, NPAD), jnp.float32)
    b2 = b2.at[:, :C_A].set(ba2)
    b2 = b2.at[:, C_A:C_A + C_B].set(bb2)
    return w1, b1, w2, b2


def multitask_forward(embeddings, packed_params, labels_a, labels_b):
    """Forward + loss for one or many mini-batches in a single pallas_call.

    embeddings: (B, D) or (N, B, D) float32
    labels_a/labels_b: (B,) or (N, B) int
    Returns (out_a, out_b, total_loss) per mini-batch (leading N squeezed if
    a single batch was passed).
    """
    w1, b1, w2, b2 = packed_params

    single = embeddings.ndim == 2
    if single:
        embeddings = embeddings[None]
        labels_a = labels_a[None]
        labels_b = labels_b[None]
    n = embeddings.shape[0]

    grid_spec = pltpu.PrefetchScalarGridSpec(
        num_scalar_prefetch=2,            # labels_a, labels_b -> SMEM
        grid=(n,),
        in_specs=[
            pl.BlockSpec((None, B, D), lambda i, la, lb: (i, 0, 0)),      # emb
            # Weights/biases: constant index_maps -> DMA'd once, VMEM-resident.
            pl.BlockSpec((D, 2 * H), lambda i, la, lb: (0, 0)),           # w1
            pl.BlockSpec((1, 2 * H), lambda i, la, lb: (0, 0)),           # b1
            pl.BlockSpec((2 * H, NPAD), lambda i, la, lb: (0, 0)),        # w2
            pl.BlockSpec((1, NPAD), lambda i, la, lb: (0, 0)),            # b2
        ],
        out_specs=pl.BlockSpec((None, B, NPAD), lambda i, la, lb: (i, 0, 0)),
    )

    flops = n * (2 * B * D * (2 * H) + 2 * B * (2 * H) * NPAD)
    transcendentals = n * (2 * B * NPAD + B)
    bytes_accessed = (n * B * D * 4 + n * B * NPAD * 4
                      + D * 2 * H * 2 + 2 * H * 4
                      + 2 * H * NPAD * 2 + NPAD * 4
                      + 2 * n * B * 4)

    logits = pl.pallas_call(
        multitask_kernel,
        out_shape=jax.ShapeDtypeStruct((n, B, NPAD), jnp.float32),
        grid_spec=grid_spec,
        compiler_params=pltpu.CompilerParams(
            dimension_semantics=("parallel",)),
        cost_estimate=pl.CostEstimate(flops=flops,
                                      transcendentals=transcendentals,
                                      bytes_accessed=bytes_accessed),
    )(labels_a.astype(jnp.int32), labels_b.astype(jnp.int32),
      embeddings.astype(jnp.float32), w1, b1, w2, b2)

    out_a = logits[..., :C_A]
    out_b = logits[..., C_A:C_A + C_B]
    loss = logits[:, 0, NPAD - 1]
    if single:
        return out_a[0], out_b[0], loss[0]
    return out_a, out_b, loss


def init_params(key):
    """Deterministic parameter init (uniform, PyTorch-Linear-style fan-in bound)."""
    ks = jax.random.split(key, 8)

    def lin(kw, kb, fan_in, fan_out):
        bound = 1.0 / jnp.sqrt(fan_in)
        w = jax.random.uniform(kw, (fan_in, fan_out), jnp.float32, -bound, bound)
        b = jax.random.uniform(kb, (1, fan_out), jnp.float32, -bound, bound)
        return w, b

    wa1, ba1 = lin(ks[0], ks[1], D, H)
    wa2, ba2 = lin(ks[2], ks[3], H, C_A)
    wb1, bb1 = lin(ks[4], ks[5], D, H)
    wb2, bb2 = lin(ks[6], ks[7], H, C_B)
    return wa1, ba1, wa2, ba2, wb1, bb1, wb2, bb2


def reference_forward(embeddings, params, labels_a, labels_b):
    """Pure-JAX reference using the same bf16-operand / f32-accumulate numerics."""
    wa1, ba1, wa2, ba2, wb1, bb1, wb2, bb2 = params
    bf = lambda x: x.astype(jnp.bfloat16).astype(jnp.float32)
    e = bf(embeddings)
    ha = jnp.maximum(e @ bf(wa1) + ba1, 0.0)
    la = bf(ha) @ bf(wa2) + ba2
    hb = jnp.maximum(e @ bf(wb1) + bb1, 0.0)
    lb = bf(hb) @ bf(wb2) + bb2

    def ce(logits, labels, n_cls):
        lse = jax.scipy.special.logsumexp(logits, axis=-1)
        picked = jnp.sum(jax.nn.one_hot(labels, n_cls) * logits, axis=-1)
        return jnp.mean(lse - picked)

    total = (ce(la, labels_a, C_A) + ce(lb, labels_b, C_B)) / 2.0
    return la, lb, total


if __name__ == "__main__":
    key = jax.random.PRNGKey(0)
    k_emb, k_params, k_emb2, k_la, k_lb = jax.random.split(key, 5)

    # Synthetic, L2-normalized "sentence embeddings" (MiniLM outputs are normalized).
    embeddings = jax.random.normal(k_emb, (B, D), dtype=jnp.float32)
    embeddings = embeddings / jnp.linalg.norm(embeddings, axis=-1, keepdims=True)

    params = init_params(k_params)
    packed = pack_params(params)
    labels_A = jnp.array([1, 0, 1, 0], dtype=jnp.int32)
    labels_B = jnp.array([2, 0, 1, 0], dtype=jnp.int32)

    # --- Spec case: one mini-batch of 4 sentences (grid=(1,)). ---
    out_a, out_b, total_loss = multitask_forward(embeddings, packed, labels_A, labels_B)
    jax.block_until_ready((out_a, out_b, total_loss))

    ref_a, ref_b, ref_loss = reference_forward(embeddings, params, labels_A, labels_B)
    assert jnp.allclose(out_a, ref_a, atol=2e-4, rtol=2e-4)
    assert jnp.allclose(out_b, ref_b, atol=2e-4, rtol=2e-4)
    assert jnp.allclose(total_loss, ref_loss, atol=2e-4, rtol=2e-4)

    # --- Amortized case: several mini-batches in one pallas_call (weights DMA'd
    # once, grid axis "parallel" so v7x's two TensorCores can split the work). ---
    NB = 4
    emb_multi = jax.random.normal(k_emb2, (NB, B, D), dtype=jnp.float32)
    emb_multi = emb_multi / jnp.linalg.norm(emb_multi, axis=-1, keepdims=True)
    la_multi = jax.random.randint(k_la, (NB, B), 0, C_A, dtype=jnp.int32)
    lb_multi = jax.random.randint(k_lb, (NB, B), 0, C_B, dtype=jnp.int32)

    ma, mb, ml = multitask_forward(emb_multi, packed, la_multi, lb_multi)
    jax.block_until_ready((ma, mb, ml))
    for i in range(NB):
        ra, rb, rl = reference_forward(emb_multi[i], params, la_multi[i], lb_multi[i])
        assert jnp.allclose(ma[i], ra, atol=2e-4, rtol=2e-4)
        assert jnp.allclose(mb[i], rb, atol=2e-4, rtol=2e-4)
        assert jnp.allclose(ml[i], rl, atol=2e-4, rtol=2e-4)

    print("KERNEL_OK")
</pallas_src>

<mosaic_0001>
module attributes {stable_mosaic.version = 11 : i64} {
  func.func @multitask_kernel(%arg0: i32, %arg1: memref<1x4xi32, #tpu.memory_space<smem>>, %arg2: memref<1x4xi32, #tpu.memory_space<smem>>, %arg3: memref<1x4x384xf32, #tpu.memory_space<vmem>>, %arg4: memref<384x256xbf16, #tpu.memory_space<vmem>>, %arg5: memref<1x256xf32, #tpu.memory_space<vmem>>, %arg6: memref<256x128xbf16, #tpu.memory_space<vmem>>, %arg7: memref<1x128xf32, #tpu.memory_space<vmem>>, %arg8: memref<1x4x128xf32, #tpu.memory_space<vmem>>) attributes {dimension_semantics = [#tpu.dimension_semantics<parallel>], iteration_bounds = array<i64: 1>, scalar_prefetch = 2 : i64, scratch_operands = 0 : i64, tpu.core_type = #tpu.core_type<tc>, window_params = [{transform_indices = @transform_0, window_bounds = array<i64: 1, 4, 384>}, {pipeline_mode = #tpu.pipeline_mode<synchronous>, transform_indices = @transform_1, window_bounds = array<i64: 384, 256>}, {pipeline_mode = #tpu.pipeline_mode<synchronous>, transform_indices = @transform_2, window_bounds = array<i64: 1, 256>}, {pipeline_mode = #tpu.pipeline_mode<synchronous>, transform_indices = @transform_3, window_bounds = array<i64: 256, 128>}, {pipeline_mode = #tpu.pipeline_mode<synchronous>, transform_indices = @transform_4, window_bounds = array<i64: 1, 128>}, {transform_indices = @transform_5, window_bounds = array<i64: 1, 4, 128>}]} {
    %c0 = arith.constant 0 : index
    %c0_0 = arith.constant 0 : index
    %c0_1 = arith.constant 0 : index
    %0 = vector.load %arg3[%c0, %c0_0, %c0_1] : memref<1x4x384xf32, #tpu.memory_space<vmem>>, vector<1x4x384xf32>
    %1 = vector.shape_cast %0 : vector<1x4x384xf32> to vector<4x384xf32>
    %2 = arith.truncf %1 : vector<4x384xf32> to vector<4x384xbf16>
    %c0_2 = arith.constant 0 : index
    %c0_3 = arith.constant 0 : index
    %3 = vector.load %arg4[%c0_2, %c0_3] : memref<384x256xbf16, #tpu.memory_space<vmem>>, vector<384x256xbf16>
    %cst = arith.constant dense<0.000000e+00> : vector<4x256xf32>
    %4 = tpu.matmul %2, %3, %cst {dimension_numbers = #tpu.dot_dimension_numbers<[1], [0], [0], [1], [0, 0, 1, 1], [], []>} : vector<4x384xbf16>, vector<384x256xbf16>, vector<4x256xf32> -> vector<4x256xf32>
    %c0_4 = arith.constant 0 : index
    %c0_5 = arith.constant 0 : index
    %5 = vector.load %arg5[%c0_4, %c0_5] : memref<1x256xf32, #tpu.memory_space<vmem>>, vector<1x256xf32>
    %6 = vector.broadcast %5 : vector<1x256xf32> to vector<4x256xf32>
    %7 = arith.addf %4, %6 : vector<4x256xf32>
    %cst_6 = arith.constant 0.000000e+00 : f32
    %8 = vector.broadcast %cst_6 : f32 to vector<4x256xf32>
    %9 = arith.maximumf %7, %8 : vector<4x256xf32>
    %10 = arith.truncf %9 : vector<4x256xf32> to vector<4x256xbf16>
    %c0_7 = arith.constant 0 : index
    %c0_8 = arith.constant 0 : index
    %11 = vector.load %arg6[%c0_7, %c0_8] : memref<256x128xbf16, #tpu.memory_space<vmem>>, vector<256x128xbf16>
    %cst_9 = arith.constant dense<0.000000e+00> : vector<4x128xf32>
    %12 = tpu.matmul %10, %11, %cst_9 {dimension_numbers = #tpu.dot_dimension_numbers<[1], [0], [0], [1], [0, 0, 1, 1], [], []>} : vector<4x256xbf16>, vector<256x128xbf16>, vector<4x128xf32> -> vector<4x128xf32>
    %c0_10 = arith.constant 0 : index
    %c0_11 = arith.constant 0 : index
    %13 = vector.load %arg7[%c0_10, %c0_11] : memref<1x128xf32, #tpu.memory_space<vmem>>, vector<1x128xf32>
    %14 = vector.broadcast %13 : vector<1x128xf32> to vector<4x128xf32>
    %15 = arith.addf %12, %14 : vector<4x128xf32>
    %16 = tpu.iota {dimensions = array<i32: 1>} : vector<4x128xi32>
    %17 = tpu.iota {dimensions = array<i32: 0>} : vector<4x128xi32>
    %c2_i32 = arith.constant 2 : i32
    %18 = vector.broadcast %c2_i32 : i32 to vector<4x128xi32>
    %19 = arith.cmpi slt, %16, %18 : vector<4x128xi32>
    %c2_i32_12 = arith.constant 2 : i32
    %20 = vector.broadcast %c2_i32_12 : i32 to vector<4x128xi32>
    %21 = arith.cmpi sge, %16, %20 : vector<4x128xi32>
    %c5_i32 = arith.constant 5 : i32
    %22 = vector.broadcast %c5_i32 : i32 to vector<4x128xi32>
    %23 = arith.cmpi slt, %16, %22 : vector<4x128xi32>
    %24 = arith.andi %21, %23 : vector<4x128xi1>
    %cst_13 = arith.constant -1.000000e+30 : f32
    %25 = vector.broadcast %cst_13 : f32 to vector<4x128xf32>
    %26 = arith.select %19, %15, %25 : vector<4x128xi1>, vector<4x128xf32>
    %cst_14 = arith.constant -1.000000e+30 : f32
    %27 = vector.broadcast %cst_14 : f32 to vector<4x128xf32>
    %28 = arith.select %24, %15, %27 : vector<4x128xi1>, vector<4x128xf32>
    %cst_15 = arith.constant dense<0xFF800000> : vector<4xf32>
    %29 = vector.multi_reduction <maximumf>, %26, %cst_15 [1] : vector<4x128xf32> to vector<4xf32>
    %30 = vector.shape_cast %29 : vector<4xf32> to vector<4x1xf32>
    %cst_16 = arith.constant dense<0xFF800000> : vector<4xf32>
    %31 = vector.multi_reduction <maximumf>, %28, %cst_16 [1] : vector<4x128xf32> to vector<4xf32>
    %32 = vector.shape_cast %31 : vector<4xf32> to vector<4x1xf32>
    %33 = vector.broadcast %30 : vector<4x1xf32> to vector<4x128xf32>
    %34 = arith.subf %26, %33 : vector<4x128xf32>
    %35 = math.exp %34 : vector<4x128xf32>
    %cst_17 = arith.constant 0.000000e+00 : f32
    %36 = vector.broadcast %cst_17 : f32 to vector<4x128xf32>
    %37 = arith.select %19, %35, %36 : vector<4x128xi1>, vector<4x128xf32>
    %cst_18 = arith.constant dense<0.000000e+00> : vector<4xf32>
    %38 = vector.multi_reduction <add>, %37, %cst_18 [1] : vector<4x128xf32> to vector<4xf32>
    %39 = vector.shape_cast %38 : vector<4xf32> to vector<4x1xf32>
    %40 = vector.broadcast %32 : vector<4x1xf32> to vector<4x128xf32>
    %41 = arith.subf %28, %40 : vector<4x128xf32>
    %42 = math.exp %41 : vector<4x128xf32>
    %cst_19 = arith.constant 0.000000e+00 : f32
    %43 = vector.broadcast %cst_19 : f32 to vector<4x128xf32>
    %44 = arith.select %24, %42, %43 : vector<4x128xi1>, vector<4x128xf32>
    %cst_20 = arith.constant dense<0.000000e+00> : vector<4xf32>
    %45 = vector.multi_reduction <add>, %44, %cst_20 [1] : vector<4x128xf32> to vector<4xf32>
    %46 = vector.shape_cast %45 : vector<4xf32> to vector<4x1xf32>
    %47 = arith.addf %30, %32 : vector<4x1xf32>
    %48 = arith.mulf %39, %46 : vector<4x1xf32>
    %49 = math.log %48 : vector<4x1xf32>
    %50 = arith.addf %47, %49 : vector<4x1xf32>
    %cst_21 = arith.constant dense<0.000000e+00> : vector<1xf32>
    %51 = vector.multi_reduction <add>, %50, %cst_21 [0] : vector<4x1xf32> to vector<1xf32>
    %52 = vector.shape_cast %51 : vector<1xf32> to vector<1x1xf32>
    %53 = arith.index_cast %arg0 : i32 to index
    %c0_22 = arith.constant 0 : index
    %54 = memref.load %arg1[%53, %c0_22] : memref<1x4xi32, #tpu.memory_space<smem>>
    %55 = arith.index_cast %arg0 : i32 to index
    %c0_23 = arith.constant 0 : index
    %56 = memref.load %arg2[%55, %c0_23] : memref<1x4xi32, #tpu.memory_space<smem>>
    %c2_i32_24 = arith.constant 2 : i32
    %57 = arith.addi %56, %c2_i32_24 : i32
    %c0_i32 = arith.constant 0 : i32
    %58 = vector.broadcast %c0_i32 : i32 to vector<4x128xi32>
    %59 = arith.cmpi eq, %17, %58 : vector<4x128xi32>
    %60 = vector.broadcast %54 : i32 to vector<4x128xi32>
    %61 = arith.cmpi eq, %16, %60 : vector<4x128xi32>
    %62 = vector.broadcast %57 : i32 to vector<4x128xi32>
    %63 = arith.cmpi eq, %16, %62 : vector<4x128xi32>
    %64 = arith.ori %61, %63 : vector<4x128xi1>
    %65 = arith.andi %59, %64 : vector<4x128xi1>
    %66 = arith.index_cast %arg0 : i32 to index
    %c1 = arith.constant 1 : index
    %67 = memref.load %arg1[%66, %c1] : memref<1x4xi32, #tpu.memory_space<smem>>
    %68 = arith.index_cast %arg0 : i32 to index
    %c1_25 = arith.constant 1 : index
    %69 = memref.load %arg2[%68, %c1_25] : memref<1x4xi32, #tpu.memory_space<smem>>
    %c2_i32_26 = arith.constant 2 : i32
    %70 = arith.addi %69, %c2_i32_26 : i32
    %c1_i32 = arith.constant 1 : i32
    %71 = vector.broadcast %c1_i32 : i32 to vector<4x128xi32>
    %72 = arith.cmpi eq, %17, %71 : vector<4x128xi32>
    %73 = vector.broadcast %67 : i32 to vector<4x128xi32>
    %74 = arith.cmpi eq, %16, %73 : vector<4x128xi32>
    %75 = vector.broadcast %70 : i32 to vector<4x128xi32>
    %76 = arith.cmpi eq, %16, %75 : vector<4x128xi32>
    %77 = arith.ori %74, %76 : vector<4x128xi1>
    %78 = arith.andi %72, %77 : vector<4x128xi1>
    %79 = arith.ori %65, %78 : vector<4x128xi1>
    %80 = arith.index_cast %arg0 : i32 to index
    %c2 = arith.constant 2 : index
    %81 = memref.load %arg1[%80, %c2] : memref<1x4xi32, #tpu.memory_space<smem>>
    %82 = arith.index_cast %arg0 : i32 to index
    %c2_27 = arith.constant 2 : index
    %83 = memref.load %arg2[%82, %c2_27] : memref<1x4xi32, #tpu.memory_space<smem>>
    %c2_i32_28 = arith.constant 2 : i32
    %84 = arith.addi %83, %c2_i32_28 : i32
    %c2_i32_29 = arith.constant 2 : i32
    %85 = vector.broadcast %c2_i32_29 : i32 to vector<4x128xi32>
    %86 = arith.cmpi eq, %17, %85 : vector<4x128xi32>
    %87 = vector.broadcast %81 : i32 to vector<4x128xi32>
    %88 = arith.cmpi eq, %16, %87 : vector<4x128xi32>
    %89 = vector.broadcast %84 : i32 to vector<4x128xi32>
    %90 = arith.cmpi eq, %16, %89 : vector<4x128xi32>
    %91 = arith.ori %88, %90 : vector<4x128xi1>
    %92 = arith.andi %86, %91 : vector<4x128xi1>
    %93 = arith.ori %79, %92 : vector<4x128xi1>
    %94 = arith.index_cast %arg0 : i32 to index
    %c3 = arith.constant 3 : index
    %95 = memref.load %arg1[%94, %c3] : memref<1x4xi32, #tpu.memory_space<smem>>
    %96 = arith.index_cast %arg0 : i32 to index
    %c3_30 = arith.constant 3 : index
    %97 = memref.load %arg2[%96, %c3_30] : memref<1x4xi32, #tpu.memory_space<smem>>
    %c2_i32_31 = arith.constant 2 : i32
    %98 = arith.addi %97, %c2_i32_31 : i32
    %c3_i32 = arith.constant 3 : i32
    %99 = vector.broadcast %c3_i32 : i32 to vector<4x128xi32>
    %100 = arith.cmpi eq, %17, %99 : vector<4x128xi32>
    %101 = vector.broadcast %95 : i32 to vector<4x128xi32>
    %102 = arith.cmpi eq, %16, %101 : vector<4x128xi32>
    %103 = vector.broadcast %98 : i32 to vector<4x128xi32>
    %104 = arith.cmpi eq, %16, %103 : vector<4x128xi32>
    %105 = arith.ori %102, %104 : vector<4x128xi1>
    %106 = arith.andi %100, %105 : vector<4x128xi1>
    %107 = arith.ori %93, %106 : vector<4x128xi1>
    %cst_32 = arith.constant 0.000000e+00 : f32
    %108 = vector.broadcast %cst_32 : f32 to vector<4x128xf32>
    %109 = arith.select %107, %15, %108 : vector<4x128xi1>, vector<4x128xf32>
    %cst_33 = arith.constant dense<0.000000e+00> : vector<4xf32>
    %110 = vector.multi_reduction <add>, %109, %cst_33 [1] : vector<4x128xf32> to vector<4xf32>
    %111 = vector.shape_cast %110 : vector<4xf32> to vector<4x1xf32>
    %cst_34 = arith.constant dense<0.000000e+00> : vector<1xf32>
    %112 = vector.multi_reduction <add>, %111, %cst_34 [0] : vector<4x1xf32> to vector<1xf32>
    %113 = vector.shape_cast %112 : vector<1xf32> to vector<1x1xf32>
    %114 = arith.subf %52, %113 : vector<1x1xf32>
    %cst_35 = arith.constant 1.250000e-01 : f32
    %115 = vector.broadcast %cst_35 : f32 to vector<1x1xf32>
    %116 = arith.mulf %114, %115 : vector<1x1xf32>
    %c127_i32 = arith.constant 127 : i32
    %117 = vector.broadcast %c127_i32 : i32 to vector<4x128xi32>
    %118 = arith.cmpi eq, %16, %117 : vector<4x128xi32>
    %119 = vector.shape_cast %116 : vector<1x1xf32> to vector<1x1xf32>
    %120 = vector.broadcast %119 : vector<1x1xf32> to vector<4x128xf32>
    %121 = arith.select %118, %120, %15 : vector<4x128xi1>, vector<4x128xf32>
    %c0_36 = arith.constant 0 : index
    %c0_37 = arith.constant 0 : index
    %c0_38 = arith.constant 0 : index
    %122 = vector.load %arg8[%c0_36, %c0_37, %c0_38] : memref<1x4x128xf32, #tpu.memory_space<vmem>>, vector<1x4x128xf32>
    %123 = vector.shape_cast %122 : vector<1x4x128xf32> to vector<4x128xf32>
    %124 = vector.shape_cast %121 : vector<4x128xf32> to vector<1x4x128xf32>
    tpu.vector_store %arg8[%c0_36, %c0_37, %c0_38], %124 {strides = array<i32>} : memref<1x4x128xf32, #tpu.memory_space<vmem>>, vector<1x4x128xf32>,
    return
  }
  func.func @transform_0(%arg0: i32, %arg1: memref<1x4xi32, #tpu.memory_space<smem>>, %arg2: memref<1x4xi32, #tpu.memory_space<smem>>) -> (i32, i32, i32) {
    %c0_i32 = arith.constant 0 : i32
    %c0_i32_0 = arith.constant 0 : i32
    %c0_i32_1 = arith.constant 0 : i32
    return %arg0, %c0_i32, %c0_i32_0 : i32, i32, i32
  }
  func.func @transform_1(%arg0: i32, %arg1: memref<1x4xi32, #tpu.memory_space<smem>>, %arg2: memref<1x4xi32, #tpu.memory_space<smem>>) -> (i32, i32) {
    %c0_i32 = arith.constant 0 : i32
    %c0_i32_0 = arith.constant 0 : i32
    %c0_i32_1 = arith.constant 0 : i32
    return %c0_i32, %c0_i32_0 : i32, i32
  }
  func.func @transform_2(%arg0: i32, %arg1: memref<1x4xi32, #tpu.memory_space<smem>>, %arg2: memref<1x4xi32, #tpu.memory_space<smem>>) -> (i32, i32) {
    %c0_i32 = arith.constant 0 : i32
    %c0_i32_0 = arith.constant 0 : i32
    %c0_i32_1 = arith.constant 0 : i32
    return %c0_i32, %c0_i32_0 : i32, i32
  }
  func.func @transform_3(%arg0: i32, %arg1: memref<1x4xi32, #tpu.memory_space<smem>>, %arg2: memref<1x4xi32, #tpu.memory_space<smem>>) -> (i32, i32) {
    %c0_i32 = arith.constant 0 : i32
    %c0_i32_0 = arith.constant 0 : i32
    %c0_i32_1 = arith.constant 0 : i32
    return %c0_i32, %c0_i32_0 : i32, i32
  }
  func.func @transform_4(%arg0: i32, %arg1: memref<1x4xi32, #tpu.memory_space<smem>>, %arg2: memref<1x4xi32, #tpu.memory_space<smem>>) -> (i32, i32) {
    %c0_i32 = arith.constant 0 : i32
    %c0_i32_0 = arith.constant 0 : i32
    %c0_i32_1 = arith.constant 0 : i32
    return %c0_i32, %c0_i32_0 : i32, i32
  }
  func.func @transform_5(%arg0: i32, %arg1: memref<1x4xi32, #tpu.memory_space<smem>>, %arg2: memref<1x4xi32, #tpu.memory_space<smem>>) -> (i32, i32, i32) {
    %c0_i32 = arith.constant 0 : i32
    %c0_i32_0 = arith.constant 0 : i32
    %c0_i32_1 = arith.constant 0 : i32
    return %arg0, %c0_i32, %c0_i32_0 : i32, i32, i32
  }
}

</mosaic_0001>

<llo_original>
// kernel: tpu_custom_call.1
$region0: #{tpu_custom_call.1}
  #allocation0 [shape = 'u32[]', space=smem, size = 0x4, offset = 0x4, fixed_abs, tag = 'smem constant byte address 0x4 - core index']
  #allocation1 [shape = 'u32[144,128]{1,0:T(1,128)}', space=vmem, size = 0x12000, scoped, tag = 'internal scratch']
  #allocation2 [shape = 's32[1]{0}', space=sflag, size = 0x4, scoped, tag = 'scoped memory for tpu_custom_call.1']
  #allocation3 [shape = 'u8[512]{0}', space=smem, size = 0x200, scoped, tag = 'prefetched SMEM operand 0']
  #allocation4 [shape = 'u8[512]{0}', space=smem, size = 0x200, scoped, tag = 'prefetched SMEM operand 1']
  %s0 = inlined_call_operand.hbm [shape: s32[1,4], index: 0, kind: input, shape index: {}]
  %s1 = inlined_call_operand.vmem [shape: s32[1,4], index: 1, kind: input, shape index: {}]
  %s2 = inlined_call_operand.hbm [shape: f32[1,4,384], index: 2, kind: input, shape index: {}]
  %s3 = inlined_call_operand.hbm [shape: bf16[384,256], index: 3, kind: input, shape index: {}]
  %s4 = inlined_call_operand.vmem [shape: f32[1,256], index: 4, kind: input, shape index: {}]
  %s5 = inlined_call_operand.hbm [shape: bf16[256,128], index: 5, kind: input, shape index: {}]
  %s6 = inlined_call_operand.vmem [shape: f32[1,128], index: 6, kind: input, shape index: {}]
  %s7 = inlined_call_operand.hbm [shape: f32[1,4,128], index: 7, kind: output, shape index: {}]
  %s8 = sld [smem:[#allocation0]]
  $region42: #{tpu_custom_call.1} parent=0
    _
  %s10 = ssub.s32 1, %s8
  %s11 = scalar_select 0, %s10, %s8
  %13 = dma.hbm_to_smem %s0, 16, [#allocation3], [#allocation2]
  %s14 = sshll.u32 %s1, 4
  %s15 = int_to_ptr.vmem [resolvable:$true] %s14
  %17 = dma.vmem_to_smem %s15, 16, [#allocation4], [#allocation2]
  %18 = dma.done [#allocation2], 32
  %19 = sfence
  $region1: #{tpu_custom_call.1} parent=0
    #allocation5 [shape = 'u8[6144]{0}', space=vmem, size = 0x1800, scoped, tag = 'input window, operand 2, single buffered']
    #allocation6 [shape = 's32[1]{0}', space=sflag, size = 0x4, scoped, tag = 'scoped memory for tpu_custom_call.1']
    #allocation7 [shape = 's32[1]{0}', space=sflag, size = 0x4, scoped, tag = 'scoped memory for tpu_custom_call.1']
    #allocation8 [shape = 'u8[196608]{0}', space=vmem, size = 0x30000, scoped, tag = 'input window, operand 3, single buffered']
    #allocation9 [shape = 's32[1]{0}', space=sflag, size = 0x4, scoped, tag = 'scoped memory for tpu_custom_call.1']
    #allocation10 [shape = 'u8[65536]{0}', space=vmem, size = 0x10000, scoped, tag = 'input window, operand 5, single buffered']
    #allocation11 [shape = 'u8[2048]{0}', space=vmem, size = 0x800, scoped, tag = 'output window, operand 0, single buffered']
    %20 = vsyncpa [#allocation6], 0
    %21 = vsyncpa [#allocation9], 0
    %22 = vsyncpa [#allocation7], 0
    // Predicated region
    $region2: #{tpu_custom_call.1} parent=1 // pred_check
      _
    $region3: #{tpu_custom_call.1} parent=1 // pred_check_branch
      %24 = sbr.rel (0) target = $region5
    $region4: #{tpu_custom_call.1} parent=1 // pred_region
      %s26 = ssub.s32 192, 192
      %27 = vsyncadd [#allocation6], %s26
      %s29 = sshll.u32 [#allocation5], 4
      %s30 = int_to_ptr.vmem [resolvable:$true] %s29
      %32 = dma.hbm_to_vmem [thread:$0]  %s2, 192, %s30, [#allocation6]
    $region5: #{tpu_custom_call.1} parent=1 // pred_fallthru
      _
    // Predicated region
    $region6: #{tpu_custom_call.1} parent=1 // pred_check
      _
    $region7: #{tpu_custom_call.1} parent=1 // pred_check_branch
      %34 = sbr.rel (0) target = $region9
    $region8: #{tpu_custom_call.1} parent=1 // pred_region
      %s36 = ssub.s32 6144, 6144
      %37 = vsyncadd [#allocation9], %s36
      %s38 = sshll.u32 [#allocation8], 4
      %s39 = int_to_ptr.vmem [resolvable:$true] %s38
      %44 = dma.hbm_to_vmem [thread:$0]  %s3, 6144, %s39, [#allocation9], 128, 128, 8
    $region9: #{tpu_custom_call.1} parent=1 // pred_fallthru
      _
    // Predicated region
    $region10: #{tpu_custom_call.1} parent=1 // pred_check
      _
    $region11: #{tpu_custom_call.1} parent=1 // pred_check_branch
      %46 = sbr.rel (0) target = $region13
    $region12: #{tpu_custom_call.1} parent=1 // pred_region
      _
    $region13: #{tpu_custom_call.1} parent=1 // pred_fallthru
      _
    // Predicated region
    $region14: #{tpu_custom_call.1} parent=1 // pred_check
      _
    $region15: #{tpu_custom_call.1} parent=1 // pred_check_branch
      %48 = sbr.rel (0) target = $region17
    $region16: #{tpu_custom_call.1} parent=1 // pred_region
      %s50 = ssub.s32 2048, 2048
      %51 = vsyncadd [#allocation9], %s50
      %s52 = sshll.u32 [#allocation10], 4
      %s53 = int_to_ptr.vmem [resolvable:$true] %s52
      %58 = dma.hbm_to_vmem [thread:$0]  %s5, 2048, %s53, [#allocation9], 64, 64, 4
    $region17: #{tpu_custom_call.1} parent=1 // pred_fallthru
      _
    // Predicated region
    $region18: #{tpu_custom_call.1} parent=1 // pred_check
      _
    $region19: #{tpu_custom_call.1} parent=1 // pred_check_branch
      %60 = sbr.rel (0) target = $region21
    $region20: #{tpu_custom_call.1} parent=1 // pred_region
      _
    $region21: #{tpu_custom_call.1} parent=1 // pred_fallthru
      _
    // Predicated region
    $region22: #{tpu_custom_call.1} parent=1 // pred_check
      _
    $region23: #{tpu_custom_call.1} parent=1 // pred_check_branch
      %62 = sbr.rel (0) target = $region25
    $region24: #{tpu_custom_call.1} parent=1 // pred_region
      %63 = dma.done [#allocation6], 192
    $region25: #{tpu_custom_call.1} parent=1 // pred_fallthru
      _
    // Predicated region
    $region26: #{tpu_custom_call.1} parent=1 // pred_check
      _
    $region27: #{tpu_custom_call.1} parent=1 // pred_check_branch
      %65 = sbr.rel (0) target = $region29
    $region28: #{tpu_custom_call.1} parent=1 // pred_region
      %66 = dma.done [#allocation9], 6144
    $region29: #{tpu_custom_call.1} parent=1 // pred_fallthru
      _
    // Predicated region
    $region30: #{tpu_custom_call.1} parent=1 // pred_check
      _
    $region31: #{tpu_custom_call.1} parent=1 // pred_check_branch
      %68 = sbr.rel (0) target = $region33
    $region32: #{tpu_custom_call.1} parent=1 // pred_region
      %69 = dma.done [#allocation9], 2048
    $region33: #{tpu_custom_call.1} parent=1 // pred_fallthru
      _
    %v71 = vld [vmem:[#allocation5] sm:$0xff]
    %v72 = vld [vmem:[#allocation5 + $0x8] sm:$0xf]
    %v74 = vcombine.high %v71, %v71
    %v76 = vpack.c.bf16 %v71, %v71
    %v77 = vpack.c.bf16 %v74, %v74
    %v78 = vpack.c.bf16 %v72, %v72
    %v79 = vld [vmem:[#allocation8] sm:$0xff]
    %v80 = vld [vmem:[#allocation8 + $0x8] sm:$0xff]
    %v81 = vld [vmem:[#allocation8 + $0x10] sm:$0xff]
    %v82 = vld [vmem:[#allocation8 + $0x18] sm:$0xff]
    %v83 = vld [vmem:[#allocation8 + $0x20] sm:$0xff]
    %v84 = vld [vmem:[#allocation8 + $0x28] sm:$0xff]
    %v85 = vld [vmem:[#allocation8 + $0x30] sm:$0xff]
    %v86 = vld [vmem:[#allocation8 + $0x38] sm:$0xff]
    %v87 = vld [vmem:[#allocation8 + $0x40] sm:$0xff]
    %v88 = vld [vmem:[#allocation8 + $0x48] sm:$0xff]
    %v89 = vld [vmem:[#allocation8 + $0x50] sm:$0xff]
    %v90 = vld [vmem:[#allocation8 + $0x58] sm:$0xff]
    %v91 = vld [vmem:[#allocation8 + $0x60] sm:$0xff]
    %v92 = vld [vmem:[#allocation8 + $0x68] sm:$0xff]
    %v93 = vld [vmem:[#allocation8 + $0x70] sm:$0xff]
    %v94 = vld [vmem:[#allocation8 + $0x78] sm:$0xff]
    %v95 = vld [vmem:[#allocation8 + $0x80] sm:$0xff]
    %v96 = vld [vmem:[#allocation8 + $0x88] sm:$0xff]
    %v97 = vld [vmem:[#allocation8 + $0x90] sm:$0xff]
    %v98 = vld [vmem:[#allocation8 + $0x98] sm:$0xff]
    %v99 = vld [vmem:[#allocation8 + $0xa0] sm:$0xff]
    %v100 = vld [vmem:[#allocation8 + $0xa8] sm:$0xff]
    %v101 = vld [vmem:[#allocation8 + $0xb0] sm:$0xff]
    %v102 = vld [vmem:[#allocation8 + $0xb8] sm:$0xff]
    %v103 = vld [vmem:[#allocation8 + $0xc0] sm:$0xff]
    %v104 = vld [vmem:[#allocation8 + $0xc8] sm:$0xff]
    %v105 = vld [vmem:[#allocation8 + $0xd0] sm:$0xff]
    %v106 = vld [vmem:[#allocation8 + $0xd8] sm:$0xff]
    %v107 = vld [vmem:[#allocation8 + $0xe0] sm:$0xff]
    %v108 = vld [vmem:[#allocation8 + $0xe8] sm:$0xff]
    %v109 = vld [vmem:[#allocation8 + $0xf0] sm:$0xff]
    %v110 = vld [vmem:[#allocation8 + $0xf8] sm:$0xff]
    %v111 = vld [vmem:[#allocation8 + $0x100] sm:$0xff]
    %v112 = vld [vmem:[#allocation8 + $0x108] sm:$0xff]
    %v113 = vld [vmem:[#allocation8 + $0x110] sm:$0xff]
    %v114 = vld [vmem:[#allocation8 + $0x118] sm:$0xff]
    %v115 = vld [vmem:[#allocation8 + $0x120] sm:$0xff]
    %v116 = vld [vmem:[#allocation8 + $0x128] sm:$0xff]
    %v117 = vld [vmem:[#allocation8 + $0x130] sm:$0xff]
    %v118 = vld [vmem:[#allocation8 + $0x138] sm:$0xff]
    %v119 = vld [vmem:[#allocation8 + $0x140] sm:$0xff]
    %v120 = vld [vmem:[#allocation8 + $0x148] sm:$0xff]
    %v121 = vld [vmem:[#allocation8 + $0x150] sm:$0xff]
    %v122 = vld [vmem:[#allocation8 + $0x158] sm:$0xff]
    %v123 = vld [vmem:[#allocation8 + $0x160] sm:$0xff]
    %v124 = vld [vmem:[#allocation8 + $0x168] sm:$0xff]
    %v125 = vld [vmem:[#allocation8 + $0x170] sm:$0xff]
    %v126 = vld [vmem:[#allocation8 + $0x178] sm:$0xff]
    %v127 = vld [vmem:[%s4] sm:$0x3]
    %v129 = vlaneseq
    %v130 = vshrl.u32 %v129, 7
    %v131 = vsub.s32 0, %v130
    %v132 = vrot.slane %v127, %v131
    %v133 = vlaneseq
    %v134 = vshrl.u32 %v133, 7
    %v135 = vsub.s32 1, %v134
    %v136 = vrot.slane %v127, %v135
    %v187 = vunpack.c.l.b16 %v79
    %v188 = vunpack.c.h.b16 %v79
    %v189 = vunpack.c.l.b16 %v80
    %v190 = vunpack.c.h.b16 %v80
    %v191 = vunpack.c.l.b16 %v81
    %v192 = vunpack.c.h.b16 %v81
    %v193 = vunpack.c.l.b16 %v82
    %v194 = vunpack.c.h.b16 %v82
    %v195 = vunpack.c.l.b16 %v83
    %v196 = vunpack.c.h.b16 %v83
    %v197 = vunpack.c.l.b16 %v84
    %v198 = vunpack.c.h.b16 %v84
    %v199 = vunpack.c.l.b16 %v85
    %v200 = vunpack.c.h.b16 %v85
    %v201 = vunpack.c.l.b16 %v86
    %v202 = vunpack.c.h.b16 %v86
    %v203 = vunpack.c.l.b16 %v87
    %v204 = vunpack.c.h.b16 %v87
    %v205 = vunpack.c.l.b16 %v88
    %v206 = vunpack.c.h.b16 %v88
    %v207 = vunpack.c.l.b16 %v89
    %v208 = vunpack.c.h.b16 %v89
    %v209 = vunpack.c.l.b16 %v90
    %v210 = vunpack.c.h.b16 %v90
    %v211 = vunpack.c.l.b16 %v91
    %v212 = vunpack.c.h.b16 %v91
    %v213 = vunpack.c.l.b16 %v92
    %v214 = vunpack.c.h.b16 %v92
    %v215 = vunpack.c.l.b16 %v93
    %v216 = vunpack.c.h.b16 %v93
    %v217 = vunpack.c.l.b16 %v94
    %v218 = vunpack.c.h.b16 %v94
    %v219 = vunpack.c.l.b16 %v95
    %v220 = vunpack.c.h.b16 %v95
    %v221 = vunpack.c.l.b16 %v96
    %v222 = vunpack.c.h.b16 %v96
    %v223 = vunpack.c.l.b16 %v97
    %v224 = vunpack.c.h.b16 %v97
    %v225 = vunpack.c.l.b16 %v98
    %v226 = vunpack.c.h.b16 %v98
    %v227 = vunpack.c.l.b16 %v99
    %v228 = vunpack.c.h.b16 %v99
    %v229 = vunpack.c.l.b16 %v100
    %v230 = vunpack.c.h.b16 %v100
    %v231 = vunpack.c.l.b16 %v101
    %v232 = vunpack.c.h.b16 %v101
    %v233 = vunpack.c.l.b16 %v102
    %v234 = vunpack.c.h.b16 %v102
    %v235 = vunpack.c.l.b16 %v103
    %v236 = vunpack.c.h.b16 %v103
    %v237 = vunpack.c.l.b16 %v104
    %v238 = vunpack.c.h.b16 %v104
    %v239 = vunpack.c.l.b16 %v105
    %v240 = vunpack.c.h.b16 %v105
    %v241 = vunpack.c.l.b16 %v106
    %v242 = vunpack.c.h.b16 %v106
    %v243 = vunpack.c.l.b16 %v107
    %v244 = vunpack.c.h.b16 %v107
    %v245 = vunpack.c.l.b16 %v108
    %v246 = vunpack.c.h.b16 %v108
    %v247 = vunpack.c.l.b16 %v109
    %v248 = vunpack.c.h.b16 %v109
    %v249 = vunpack.c.l.b16 %v110
    %v250 = vunpack.c.h.b16 %v110
    %v251 = vunpack.c.l.b16 %v111
    %v252 = vunpack.c.h.b16 %v111
    %v253 = vunpack.c.l.b16 %v112
    %v254 = vunpack.c.h.b16 %v112
    %v255 = vunpack.c.l.b16 %v113
    %v256 = vunpack.c.h.b16 %v113
    %v257 = vunpack.c.l.b16 %v114
    %v258 = vunpack.c.h.b16 %v114
    %v259 = vunpack.c.l.b16 %v115
    %v260 = vunpack.c.h.b16 %v115
    %v261 = vunpack.c.l.b16 %v116
    %v262 = vunpack.c.h.b16 %v116
    %v263 = vunpack.c.l.b16 %v117
    %v264 = vunpack.c.h.b16 %v117
    %v265 = vunpack.c.l.b16 %v118
    %v266 = vunpack.c.h.b16 %v118
    %v267 = vunpack.c.l.b16 %v119
    %v268 = vunpack.c.h.b16 %v119
    %v269 = vunpack.c.l.b16 %v120
    %v270 = vunpack.c.h.b16 %v120
    %v271 = vunpack.c.l.b16 %v121
    %v272 = vunpack.c.h.b16 %v121
    %v273 = vunpack.c.l.b16 %v122
    %v274 = vunpack.c.h.b16 %v122
    %v275 = vunpack.c.l.b16 %v123
    %v276 = vunpack.c.h.b16 %v123
    %v277 = vunpack.c.l.b16 %v124
    %v278 = vunpack.c.h.b16 %v124
    %v279 = vunpack.c.l.b16 %v125
    %v280 = vunpack.c.h.b16 %v125
    %v281 = vunpack.c.l.b16 %v126
    %v282 = vunpack.c.h.b16 %v126
    %v283 = vpack.c.b16 %v189, %v187
    %v284 = vpack.c.b16 %v190, %v188
    %v285 = vpack.c.b16 %v193, %v191
    %v286 = vpack.c.b16 %v194, %v192
    %v287 = vpack.c.b16 %v197, %v195
    %v288 = vpack.c.b16 %v198, %v196
    %v289 = vpack.c.b16 %v201, %v199
    %v290 = vpack.c.b16 %v202, %v200
    %v291 = vpack.c.b16 %v205, %v203
    %v292 = vpack.c.b16 %v206, %v204
    %v293 = vpack.c.b16 %v209, %v207
    %v294 = vpack.c.b16 %v210, %v208
    %v295 = vpack.c.b16 %v213, %v211
    %v296 = vpack.c.b16 %v214, %v212
    %v297 = vpack.c.b16 %v217, %v215
    %v298 = vpack.c.b16 %v218, %v216
    %v299 = vpack.c.b16 %v221, %v219
    %v300 = vpack.c.b16 %v222, %v220
    %v301 = vpack.c.b16 %v225, %v223
    %v302 = vpack.c.b16 %v226, %v224
    %v303 = vpack.c.b16 %v229, %v227
    %v304 = vpack.c.b16 %v230, %v228
    %v305 = vpack.c.b16 %v233, %v231
    %v306 = vpack.c.b16 %v234, %v232
    %v307 = vpack.c.b16 %v237, %v235
    %v308 = vpack.c.b16 %v238, %v236
    %v309 = vpack.c.b16 %v241, %v239
    %v310 = vpack.c.b16 %v242, %v240
    %v311 = vpack.c.b16 %v245, %v243
    %v312 = vpack.c.b16 %v246, %v244
    %v313 = vpack.c.b16 %v249, %v247
    %v314 = vpack.c.b16 %v250, %v248
    %v315 = vpack.c.b16 %v253, %v251
    %v316 = vpack.c.b16 %v254, %v252
    %v317 = vpack.c.b16 %v257, %v255
    %v318 = vpack.c.b16 %v258, %v256
    %v319 = vpack.c.b16 %v261, %v259
    %v320 = vpack.c.b16 %v262, %v260
    %v321 = vpack.c.b16 %v265, %v263
    %v322 = vpack.c.b16 %v266, %v264
    %v323 = vpack.c.b16 %v269, %v267
    %v324 = vpack.c.b16 %v270, %v268
    %v325 = vpack.c.b16 %v273, %v271
    %v326 = vpack.c.b16 %v274, %v272
    %v327 = vpack.c.b16 %v277, %v275
    %v328 = vpack.c.b16 %v278, %v276
    %v329 = vpack.c.b16 %v281, %v279
    %v330 = vpack.c.b16 %v282, %v280
    %379 = vmatprep.subr.bf16.mxu0 %v298
    %380 = vmatpush1.bf16.msra.mxu0 %v297
    %381 = vmatprep.subr.bf16.mxu0 %v296
    %382 = vmatpush1.bf16.msra.mxu0 %v295
    %383 = vmatprep.subr.bf16.mxu0 %v294
    %384 = vmatpush1.bf16.msra.mxu0 %v293
    %385 = vmatprep.subr.bf16.mxu0 %v292
    %386 = vmatpush1.bf16.msra.mxu0 %v291
    %387 = vmatprep.subr.bf16.mxu0 %v290
    %388 = vmatpush1.bf16.msra.mxu0 %v289
    %389 = vmatprep.subr.bf16.mxu0 %v288
    %390 = vmatpush1.bf16.msra.mxu0 %v287
    %391 = vmatprep.subr.bf16.mxu0 %v286
    %392 = vmatpush1.bf16.msra.mxu0 %v285
    %393 = vmatprep.subr.bf16.mxu0 %v284
    %394 = vmatpush1.bf16.msra.mxu0 %v283
    %395 = vmatprep.subr.bf16.mxu0 %v314
    %396 = vmatpush2.bf16.msra.mxu0 %v313
    %397 = vmatprep.subr.bf16.mxu0 %v312
    %398 = vmatpush2.bf16.msra.mxu0 %v311
    %399 = vmatprep.subr.bf16.mxu0 %v310
    %400 = vmatpush2.bf16.msra.mxu0 %v309
    %401 = vmatprep.subr.bf16.mxu0 %v308
    %402 = vmatpush2.bf16.msra.mxu0 %v307
    %403 = vmatprep.subr.bf16.mxu0 %v306
    %404 = vmatpush2.bf16.msra.mxu0 %v305
    %405 = vmatprep.subr.bf16.mxu0 %v304
    %406 = vmatpush2.bf16.msra.mxu0 %v303
    %407 = vmatprep.subr.bf16.mxu0 %v302
    %408 = vmatpush2.bf16.msra.mxu0 %v301
    %409 = vmatprep.subr.bf16.mxu0 %v300
    %410 = vmatpush2.bf16.msra.mxu0 %v299
    %411 = vmatprep.mubr.bf16.mxu0 %v77
    %412 = vmatmul.mubr.bf16.gmra.mxu0 %v76
    %v413 = vpop.f32.mrf.mxu0
    %v414 = vadd.f32 %v132, %v413
    %v415 = vpop.f32.mrf.mxu0
    %v416 = vadd.f32 %v136, %v415
    %v417 = vpop.f32.mrf.mxu0
    %v418 = vpop.f32.mrf.mxu0
    %419 = vdwg.mxu0
    %420 = vmatprep.subr.bf16.mxu0 %v330
    %421 = vmatpush1.bf16.msra.mxu0 %v329
    %422 = vmatprep.subr.bf16.mxu0 %v328
    %423 = vmatpush1.bf16.msra.mxu0 %v327
    %424 = vmatprep.subr.bf16.mxu0 %v326
    %425 = vmatpush1.bf16.msra.mxu0 %v325
    %426 = vmatprep.subr.bf16.mxu0 %v324
    %427 = vmatpush1.bf16.msra.mxu0 %v323
    %428 = vmatprep.subr.bf16.mxu0 %v322
    %429 = vmatpush1.bf16.msra.mxu0 %v321
    %430 = vmatprep.subr.bf16.mxu0 %v320
    %431 = vmatpush1.bf16.msra.mxu0 %v319
    %432 = vmatprep.subr.bf16.mxu0 %v318
    %433 = vmatpush1.bf16.msra.mxu0 %v317
    %434 = vmatprep.subr.bf16.mxu0 %v316
    %435 = vmatpush1.bf16.msra.mxu0 %v315
    %436 = vmatprep.subr.bf16.mxu0 0
    %437 = vmatpush2.bf16.msra.mxu0 0
    %438 = vmatprep.subr.bf16.mxu0 0
    %439 = vmatpush2.bf16.msra.mxu0 0
    %440 = vmatprep.subr.bf16.mxu0 0
    %441 = vmatpush2.bf16.msra.mxu0 0
    %442 = vmatprep.subr.bf16.mxu0 0
    %443 = vmatpush2.bf16.msra.mxu0 0
    %444 = vmatprep.subr.bf16.mxu0 0
    %445 = vmatpush2.bf16.msra.mxu0 0
    %446 = vmatprep.subr.bf16.mxu0 0
    %447 = vmatpush2.bf16.msra.mxu0 0
    %448 = vmatprep.subr.bf16.mxu0 0
    %449 = vmatpush2.bf16.msra.mxu0 0
    %450 = vmatprep.subr.bf16.mxu0 0
    %451 = vmatpush2.bf16.msra.mxu0 0
    %452 = vmatprep.mubr.bf16.mxu0 0
    %453 = vmatmul.mubr.bf16.gmra.mxu0 %v78
    %v454 = vpop.f32.mrf.mxu0
    %v455 = vadd.f32 %v414, %v454
    %v456 = vpop.f32.mrf.mxu0
    %v457 = vadd.f32 %v416, %v456
    %v458 = vpop.f32.mrf.mxu0
    %v459 = vpop.f32.mrf.mxu0
    %460 = vdwg.mxu0
    %v461 = vmax.f32 %v455, 0.0
    %v462 = vmax.f32 %v457, 0.0
    %v463 = vpack.c.bf16 %v461, %v461
    %v464 = vpack.c.bf16 %v462, %v462
    %v465 = vld [vmem:[#allocation10] sm:$0xf]
    %v466 = vld [vmem:[#allocation10 + $0x4] sm:$0xf]
    %v467 = vld [vmem:[#allocation10 + $0x8] sm:$0xf]
    %v468 = vld [vmem:[#allocation10 + $0xc] sm:$0xf]
    %v469 = vld [vmem:[#allocation10 + $0x10] sm:$0xf]
    %v470 = vld [vmem:[#allocation10 + $0x14] sm:$0xf]
    %v471 = vld [vmem:[#allocation10 + $0x18] sm:$0xf]
    %v472 = vld [vmem:[#allocation10 + $0x1c] sm:$0xf]
    %v473 = vld [vmem:[#allocation10 + $0x20] sm:$0xf]
    %v474 = vld [vmem:[#allocation10 + $0x24] sm:$0xf]
    %v475 = vld [vmem:[#allocation10 + $0x28] sm:$0xf]
    %v476 = vld [vmem:[#allocation10 + $0x2c] sm:$0xf]
    %v477 = vld [vmem:[#allocation10 + $0x30] sm:$0xf]
    %v478 = vld [vmem:[#allocation10 + $0x34] sm:$0xf]
    %v479 = vld [vmem:[#allocation10 + $0x38] sm:$0xf]
    %v480 = vld [vmem:[#allocation10 + $0x3c] sm:$0xf]
    %v481 = vld [vmem:[#allocation10 + $0x40] sm:$0xf]
    %v482 = vld [vmem:[#allocation10 + $0x44] sm:$0xf]
    %v483 = vld [vmem:[#allocation10 + $0x48] sm:$0xf]
    %v484 = vld [vmem:[#allocation10 + $0x4c] sm:$0xf]
    %v485 = vld [vmem:[#allocation10 + $0x50] sm:$0xf]
    %v486 = vld [vmem:[#allocation10 + $0x54] sm:$0xf]
    %v487 = vld [vmem:[#allocation10 + $0x58] sm:$0xf]
    %v488 = vld [vmem:[#allocation10 + $0x5c] sm:$0xf]
    %v489 = vld [vmem:[#allocation10 + $0x60] sm:$0xf]
    %v490 = vld [vmem:[#allocation10 + $0x64] sm:$0xf]
    %v491 = vld [vmem:[#allocation10 + $0x68] sm:$0xf]
    %v492 = vld [vmem:[#allocation10 + $0x6c] sm:$0xf]
    %v493 = vld [vmem:[#allocation10 + $0x70] sm:$0xf]
    %v494 = vld [vmem:[#allocation10 + $0x74] sm:$0xf]
    %v495 = vld [vmem:[#allocation10 + $0x78] sm:$0xf]
    %v496 = vld [vmem:[#allocation10 + $0x7c] sm:$0xf]
    %v497 = vld [vmem:[%s6] sm:$0x1]
    %v499 = vlaneseq
    %v500 = vshrl.u32 %v499, 7
    %v501 = vsub.s32 0, %v500
    %v502 = vrot.slane %v497, %v501
    %v536 = vunpack.c.l.b16 %v465
    %v537 = vunpack.c.l.b16 %v466
    %v538 = vunpack.c.l.b16 %v467
    %v539 = vunpack.c.l.b16 %v468
    %v540 = vunpack.c.l.b16 %v469
    %v541 = vunpack.c.l.b16 %v470
    %v542 = vunpack.c.l.b16 %v471
    %v543 = vunpack.c.l.b16 %v472
    %v544 = vunpack.c.l.b16 %v473
    %v545 = vunpack.c.l.b16 %v474
    %v546 = vunpack.c.l.b16 %v475
    %v547 = vunpack.c.l.b16 %v476
    %v548 = vunpack.c.l.b16 %v477
    %v549 = vunpack.c.l.b16 %v478
    %v550 = vunpack.c.l.b16 %v479
    %v551 = vunpack.c.l.b16 %v480
    %v552 = vunpack.c.l.b16 %v481
    %v553 = vunpack.c.l.b16 %v482
    %v554 = vunpack.c.l.b16 %v483
    %v555 = vunpack.c.l.b16 %v484
    %v556 = vunpack.c.l.b16 %v485
    %v557 = vunpack.c.l.b16 %v486
    %v558 = vunpack.c.l.b16 %v487
    %v559 = vunpack.c.l.b16 %v488
    %v560 = vunpack.c.l.b16 %v489
    %v561 = vunpack.c.l.b16 %v490
    %v562 = vunpack.c.l.b16 %v491
    %v563 = vunpack.c.l.b16 %v492
    %v564 = vunpack.c.l.b16 %v493
    %v565 = vunpack.c.l.b16 %v494
    %v566 = vunpack.c.l.b16 %v495
    %v567 = vunpack.c.l.b16 %v496
    %v568 = vpack.c.b16 %v537, %v536
    %v569 = vpack.c.b16 %v539, %v538
    %v570 = vpack.c.b16 %v541, %v540
    %v571 = vpack.c.b16 %v543, %v542
    %v572 = vpack.c.b16 %v545, %v544
    %v573 = vpack.c.b16 %v547, %v546
    %v574 = vpack.c.b16 %v549, %v548
    %v575 = vpack.c.b16 %v551, %v550
    %v576 = vpack.c.b16 %v553, %v552
    %v577 = vpack.c.b16 %v555, %v554
    %v578 = vpack.c.b16 %v557, %v556
    %v579 = vpack.c.b16 %v559, %v558
    %v580 = vpack.c.b16 %v561, %v560
    %v581 = vpack.c.b16 %v563, %v562
    %v582 = vpack.c.b16 %v565, %v564
    %v583 = vpack.c.b16 %v567, %v566
    %600 = vmatprep.subr.bf16.mxu0 0
    %601 = vmatpush1.bf16.msra.mxu0 %v575
    %602 = vmatprep.subr.bf16.mxu0 0
    %603 = vmatpush1.bf16.msra.mxu0 %v574
    %604 = vmatprep.subr.bf16.mxu0 0
    %605 = vmatpush1.bf16.msra.mxu0 %v573
    %606 = vmatprep.subr.bf16.mxu0 0
    %607 = vmatpush1.bf16.msra.mxu0 %v572
    %608 = vmatprep.subr.bf16.mxu0 0
    %609 = vmatpush1.bf16.msra.mxu0 %v571
    %610 = vmatprep.subr.bf16.mxu0 0
    %611 = vmatpush1.bf16.msra.mxu0 %v570
    %612 = vmatprep.subr.bf16.mxu0 0
    %613 = vmatpush1.bf16.msra.mxu0 %v569
    %614 = vmatprep.subr.bf16.mxu0 0
    %615 = vmatpush1.bf16.msra.mxu0 %v568
    %616 = vmatprep.subr.bf16.mxu0 0
    %617 = vmatpush2.bf16.msra.mxu0 %v583
    %618 = vmatprep.subr.bf16.mxu0 0
    %619 = vmatpush2.bf16.msra.mxu0 %v582
    %620 = vmatprep.subr.bf16.mxu0 0
    %621 = vmatpush2.bf16.msra.mxu0 %v581
    %622 = vmatprep.subr.bf16.mxu0 0
    %623 = vmatpush2.bf16.msra.mxu0 %v580
    %624 = vmatprep.subr.bf16.mxu0 0
    %625 = vmatpush2.bf16.msra.mxu0 %v579
    %626 = vmatprep.subr.bf16.mxu0 0
    %627 = vmatpush2.bf16.msra.mxu0 %v578
    %628 = vmatprep.subr.bf16.mxu0 0
    %629 = vmatpush2.bf16.msra.mxu0 %v577
    %630 = vmatprep.subr.bf16.mxu0 0
    %631 = vmatpush2.bf16.msra.mxu0 %v576
    %632 = vmatprep.mubr.bf16.mxu0 %v464
    %633 = vmatmul.mubr.bf16.gmra.mxu0 %v463
    %v634 = vpop.f32.mrf.mxu0
    %v635 = vadd.f32 %v502, %v634
    %v636 = vpop.f32.mrf.mxu0
    %v637 = vpop.f32.mrf.mxu0
    %v638 = vpop.f32.mrf.mxu0
    %639 = vdwg.mxu0
    %v640 = vlaneseq
    %v641 = vand.u32 %v640, 127
    %v642 = vlaneseq
    %v643 = vshrl.u32 %v642, 7
    %vm644 = vcmp.lt.s32.totalorder %v641, 2
    %vm645 = vcmp.ge.s32.totalorder %v641, 2
    %vm646 = vcmp.lt.s32.totalorder %v641, 5
    %vm647 = vmand %vm645, %vm646
    %v648 = vsel %vm644, %v635, -1e+30
    %v649 = vsel %vm647, %v635, -1e+30
    %vm650 = vcmask 1043456
    %v651 = vsel %vm650, %v648, -inf
    %652 = vmax.xlane.f32.xlu0 %v651
    %v653 = vpop.xlane.xlu0 %652
    %v654 = vsel %vm650, %v649, -inf
    %655 = vmax.xlane.f32.xlu0 %v654
    %v656 = vpop.xlane.xlu0 %655
    %v657 = vsub.f32 %v648, %v653
    %v658 = vmul.f32 %v657, 1.442695
    %v659 = vpow.pop %v658
    %v660 = vsel %vm644, %v659, 0.0
    %v661 = vsel %vm650, %v660, 0.0
    %662 = vadd.xlane.f32.xlu0 %v661
    %v663 = vpop.xlane.xlu0 %662
    %v664 = vsub.f32 %v649, %v656
    %v665 = vmul.f32 %v664, 1.442695
    %v666 = vpow.pop %v665
    %v667 = vsel %vm647, %v666, 0.0
    %v668 = vsel %vm650, %v667, 0.0
    %669 = vadd.xlane.f32.xlu0 %v668
    %v670 = vpop.xlane.xlu0 %669
    %v671 = vadd.f32 %v653, %v656
    %v672 = vmul.f32 %v663, %v670
    %v673 = vlog2.pop %v672
    %v674 = vmul.f32 %v673, 0.6931472
    %v675 = vadd.f32 %v671, %v674
    %v676 = vsel %vm650, %v675, 0.0
    %v677 = vrot.slane %v676, 4
    %v678 = vadd.f32 %v676, %v677
    %v679 = vrot.slane %v678, 2
    %v680 = vadd.f32 %v678, %v679
    %v681 = vrot.slane %v680, 1
    %v682 = vadd.f32 %v680, %v681
    %s683 = smul.u32 0, 128
    %s684 = sld [smem:[#allocation3 + %s683]]
    %s685 = sld [smem:[#allocation4 + %s683]]
    %s686 = sadd.s32 %s685, 2
    %vm687 = vcmp.eq.s32.totalorder %v643, 0
    %v688 = vstv %s684
    %vm689 = vcmp.eq.s32.totalorder %v641, %v688
    %v690 = vstv %s686
    %vm691 = vcmp.eq.s32.totalorder %v641, %v690
    %vm692 = vmor %vm689, %vm691
    %vm693 = vmand %vm687, %vm692
    %s694 = sadd.s32 %s683, 1
    %s695 = sld [smem:[#allocation3 + %s694]]
    %s696 = sld [smem:[#allocation4 + %s694]]
    %s697 = sadd.s32 %s696, 2
    %vm698 = vcmp.eq.s32.totalorder %v643, 1
    %v699 = vstv %s695
    %vm700 = vcmp.eq.s32.totalorder %v641, %v699
    %v701 = vstv %s697
    %vm702 = vcmp.eq.s32.totalorder %v641, %v701
    %vm703 = vmor %vm700, %vm702
    %vm704 = vmand %vm698, %vm703
    %vm705 = vmor %vm693, %vm704
    %s706 = sadd.s32 %s683, 2
    %s707 = sld [smem:[#allocation3 + %s706]]
    %s708 = sld [smem:[#allocation4 + %s706]]
    %s709 = sadd.s32 %s708, 2
    %vm710 = vcmp.eq.s32.totalorder %v643, 2
    %v711 = vstv %s707
    %vm712 = vcmp.eq.s32.totalorder %v641, %v711
    %v713 = vstv %s709
    %vm714 = vcmp.eq.s32.totalorder %v641, %v713
    %vm715 = vmor %vm712, %vm714
    %vm716 = vmand %vm710, %vm715
    %vm717 = vmor %vm705, %vm716
    %s718 = sadd.s32 %s683, 3
    %s719 = sld [smem:[#allocation3 + %s718]]
    %s720 = sld [smem:[#allocation4 + %s718]]
    %s721 = sadd.s32 %s720, 2
    %vm722 = vcmp.eq.s32.totalorder %v643, 3
    %v723 = vstv %s719
    %vm724 = vcmp.eq.s32.totalorder %v641, %v723
    %v725 = vstv %s721
    %vm726 = vcmp.eq.s32.totalorder %v641, %v725
    %vm727 = vmor %vm724, %vm726
    %vm728 = vmand %vm722, %vm727
    %vm729 = vmor %vm717, %vm728
    %v730 = vsel %vm729, %v635, 0.0
    %v731 = vsel %vm650, %v730, 0.0
    %732 = vadd.xlane.f32.xlu0 %v731
    %v733 = vpop.xlane.xlu0 %732
    %v734 = vsel %vm650, %v733, 0.0
    %v735 = vrot.slane %v734, 4
    %v736 = vadd.f32 %v734, %v735
    %v737 = vrot.slane %v736, 2
    %v738 = vadd.f32 %v736, %v737
    %v739 = vrot.slane %v738, 1
    %v740 = vadd.f32 %v738, %v739
    %v741 = vsub.f32 %v682, %v740
    %v742 = vmul.f32 %v741, 0.125
    %vm743 = vcmp.eq.s32.totalorder %v641, 127
    %v744 = vsel %vm743, %v742, %v635
    %745 = vst [vmem:[#allocation11] sm:$0xf] %v744
    // Predicated region
    $region34: #{tpu_custom_call.1} parent=1 // pred_check
      _
    $region35: #{tpu_custom_call.1} parent=1 // pred_check_branch
      %747 = sbr.rel (0) target = $region37
    $region36: #{tpu_custom_call.1} parent=1 // pred_region
      %s749 = ssub.s32 64, 64
      %750 = vsyncadd [#allocation7], %s749
      %s752 = sshll.u32 [#allocation11], 4
      %s753 = int_to_ptr.vmem [resolvable:$true] %s752
      %755 = dma.vmem_to_hbm [thread:$0]  %s753, 64, %s7, [#allocation7]
    $region37: #{tpu_custom_call.1} parent=1 // pred_fallthru
      _
    // Predicated region
    $region38: #{tpu_custom_call.1} parent=1 // pred_check
      _
    $region39: #{tpu_custom_call.1} parent=1 // pred_check_branch
      %757 = sbr.rel (0) target = $region41
    $region40: #{tpu_custom_call.1} parent=1 // pred_region
      %758 = dma.done [#allocation7], 64
    $region41: #{tpu_custom_call.1} parent=1 // pred_fallthru
      _
    %759 = vsyncpa [#allocation6], 1
    %760 = vsyncpa [#allocation9], 1
    %761 = vsyncpa [#allocation7], 1

</llo_original>
